<compile_context>
chip_gen: v7x
topology: tpu7x:2x2x1
jax: 0.10.0
libtpu: 0.0.40
codegen_flags: <defaults>
</compile_context>

<pallas_src>
import jax
import jax.numpy as jnp
from jax.experimental import pallas as pl
from jax.experimental.pallas import tpu as pltpu


def _meanpool_ffn_kernel(g_ref, w1_ref, b1_ref, w2_ref, b2_ref, out_ref):
    """g_ref:   (tile_B, NB, H)   gathered boundary hidden states
       w1_ref:  (H, H)    b1_ref: (1, H)      -- fp32 biases
       w2_ref:  (H, P_pad) b2_ref: (1, P_pad)
       out_ref: (tile_B, P_pad)"""
    # Mean-pool the NB boundary rows (== gather + avg_pool1d) in fp32.
    g = g_ref[...].astype(jnp.float32)                 # (tile_B, NB, H)
    feat = jnp.mean(g, axis=1)                         # (tile_B, H)

    # FFN: Linear(H,H) -> ReLU -> Dropout(0.3) -> Linear(H,P)
    # Dropout is identity at inference time (eval mode).
    h = jnp.dot(feat.astype(w1_ref.dtype), w1_ref[...],
                preferred_element_type=jnp.float32) + b1_ref[...]
    h = jnp.maximum(h, 0.0)                            # ReLU (fp32)
    out = jnp.dot(h.astype(w2_ref.dtype), w2_ref[...],
                  preferred_element_type=jnp.float32) + b2_ref[...]
    out_ref[...] = out.astype(out_ref.dtype)


def _pick_tile_b(B):
    """Largest divisor of B that keeps the per-step M dim <= 256."""
    if B <= 256:
        return B
    for t in (256, 128, 64, 32, 16, 8, 4, 2):
        if B % t == 0:
            return t
    return B


def roberta_first_last_meanpool(inputs, embed_table, w1, b1, w2, b2,
                                compute_dtype=jnp.float32):
    """Forward pass.  inputs = (text_indices, text_mask, aspect_boundary_indices,
    aspect_indices, aspect_mask), matching the PyTorch module."""
    (text_indices, text_mask, aspect_boundary_indices,
     aspect_indices, aspect_mask) = inputs

    # TODO(synk): the full RoBERTa transformer backbone has no clean single-kernel
    # equivalent; it is replaced by a deterministic embedding-table lookup
    # producing [B, S, H] hidden states (attention_mask unused in this stub).
    txt_embed = embed_table[text_indices].astype(jnp.float32)      # [B, S, H]

    B, S, H = txt_embed.shape
    NB = aspect_boundary_indices.shape[1]
    P = w2.shape[1]

    # Clamp boundary indices so an out-of-range index cannot read garbage.
    bnd = jnp.clip(aspect_boundary_indices.astype(jnp.int32), 0, S - 1)

    # Pre-gather only the NB boundary rows -> (B, NB, H). This is the big win:
    # HBM->VMEM traffic for the hidden states drops by a factor of S/NB.
    gathered = jnp.take_along_axis(
        txt_embed, bnd[:, :, None], axis=1).astype(compute_dtype)   # [B, NB, H]

    # Pad the tiny polarity dim to a full 128-lane slab for lane-dense stores.
    LANE = 128
    P_pad = ((P + LANE - 1) // LANE) * LANE
    w2p = jnp.zeros((H, P_pad), jnp.float32).at[:, :P].set(w2.astype(jnp.float32))
    b2p = jnp.zeros((1, P_pad), jnp.float32).at[:, :P].set(
        b2.reshape(1, P).astype(jnp.float32))
    b1r = b1.reshape(1, H).astype(jnp.float32)

    w1c = w1.astype(compute_dtype)
    w2c = w2p.astype(compute_dtype)

    tile_B = _pick_tile_b(B)
    grid = (B // tile_B,)

    out_pad = pl.pallas_call(
        _meanpool_ffn_kernel,
        out_shape=jax.ShapeDtypeStruct((B, P_pad), jnp.float32),
        grid_spec=pltpu.PrefetchScalarGridSpec(
            num_scalar_prefetch=0,
            grid=grid,
            in_specs=[
                # gathered boundary rows: tile over batch only
                pl.BlockSpec((tile_B, NB, H), lambda i: (i, 0, 0)),
                # weights/biases: constant index_map -> resident across grid
                pl.BlockSpec((H, H),      lambda i: (0, 0)),
                pl.BlockSpec((1, H),      lambda i: (0, 0)),
                pl.BlockSpec((H, P_pad),  lambda i: (0, 0)),
                pl.BlockSpec((1, P_pad),  lambda i: (0, 0)),
            ],
            out_specs=pl.BlockSpec((tile_B, P_pad), lambda i: (i, 0)),
        ),
        compiler_params=pltpu.CompilerParams(
            dimension_semantics=("parallel",)),   # v7x: split rows over 2 TCs
    )(gathered, w1c, b1r, w2c, b2p)

    return out_pad[:, :P]


def _reference(inputs, embed_table, w1, b1, w2, b2):
    """Plain-JAX reference mirroring the PyTorch forward (eval mode)."""
    text_indices, _, bnd, _, _ = inputs
    txt = embed_table[text_indices].astype(jnp.float32)            # [B, S, H]
    gathered = jnp.take_along_axis(txt, bnd[:, :, None], axis=1)   # [B, NB, H]
    feat = gathered.mean(axis=1)                                   # [B, H]
    h = jnp.maximum(feat @ w1 + b1.reshape(-1), 0.0)
    return h @ w2 + b2.reshape(-1)


if __name__ == "__main__":
    # small shapes consistent with the module
    B, S, H, P, NB, VOCAB = 2, 8, 32, 4, 2, 64

    key = jax.random.PRNGKey(0)
    k_emb, k_w1, k_b1, k_w2, k_b2, k_tok = jax.random.split(key, 6)

    # deterministic synthetic parameters
    embed_table = jax.random.normal(k_emb, (VOCAB, H), jnp.float32) * 0.1
    w1 = jax.random.normal(k_w1, (H, H), jnp.float32) * 0.1
    b1 = jax.random.normal(k_b1, (1, H), jnp.float32) * 0.1
    w2 = jax.random.normal(k_w2, (H, P), jnp.float32) * 0.1
    b2 = jax.random.normal(k_b2, (1, P), jnp.float32) * 0.1

    # deterministic example inputs
    text_indices = jax.random.randint(k_tok, (B, S), 0, VOCAB, jnp.int32)
    text_mask = jnp.ones((B, S), jnp.int32)
    aspect_boundary_indices = jnp.array([[2, 5], [1, 6]], jnp.int32)   # [B, NB]
    aspect_indices = jnp.zeros((B, 4), jnp.int32)
    aspect_mask = jnp.zeros((B, 4), jnp.int32)

    inputs = (text_indices, text_mask, aspect_boundary_indices,
              aspect_indices, aspect_mask)

    out = roberta_first_last_meanpool(inputs, embed_table, w1, b1, w2, b2)
    out = jax.block_until_ready(out)

    ref = _reference(inputs, embed_table, w1, b1, w2, b2)
    assert out.shape == (B, P)
    assert jnp.allclose(out, ref, atol=1e-5, rtol=1e-5)

    print("KERNEL_OK")
</pallas_src>

<mosaic_0001>
module attributes {stable_mosaic.version = 11 : i64} {
  func.func @_meanpool_ffn_kernel(%arg0: i32, %arg1: memref<2x2x32xf32, #tpu.memory_space<vmem>>, %arg2: memref<32x32xf32, #tpu.memory_space<vmem>>, %arg3: memref<1x32xf32, #tpu.memory_space<vmem>>, %arg4: memref<32x128xf32, #tpu.memory_space<vmem>>, %arg5: memref<1x128xf32, #tpu.memory_space<vmem>>, %arg6: memref<2x128xf32, #tpu.memory_space<vmem>>) attributes {dimension_semantics = [#tpu.dimension_semantics<parallel>], iteration_bounds = array<i64: 1>, scalar_prefetch = 0 : i64, scratch_operands = 0 : i64, tpu.core_type = #tpu.core_type<tc>, window_params = [{transform_indices = @transform_0, window_bounds = array<i64: 2, 2, 32>}, {pipeline_mode = #tpu.pipeline_mode<synchronous>, transform_indices = @transform_1, window_bounds = array<i64: 32, 32>}, {pipeline_mode = #tpu.pipeline_mode<synchronous>, transform_indices = @transform_2, window_bounds = array<i64: 1, 32>}, {pipeline_mode = #tpu.pipeline_mode<synchronous>, transform_indices = @transform_3, window_bounds = array<i64: 32, 128>}, {pipeline_mode = #tpu.pipeline_mode<synchronous>, transform_indices = @transform_4, window_bounds = array<i64: 1, 128>}, {transform_indices = @transform_5, window_bounds = array<i64: 2, 128>}]} {
    %c0 = arith.constant 0 : index
    %c0_0 = arith.constant 0 : index
    %c0_1 = arith.constant 0 : index
    %0 = vector.load %arg1[%c0, %c0_0, %c0_1] : memref<2x2x32xf32, #tpu.memory_space<vmem>>, vector<2x2x32xf32>
    %cst = arith.constant dense<0.000000e+00> : vector<2x32xf32>
    %1 = vector.multi_reduction <add>, %0, %cst [1] : vector<2x2x32xf32> to vector<2x32xf32>
    %cst_2 = arith.constant 2.000000e+00 : f32
    %2 = vector.broadcast %cst_2 : f32 to vector<2x32xf32>
    %3 = arith.divf %1, %2 : vector<2x32xf32>
    %c0_3 = arith.constant 0 : index
    %c0_4 = arith.constant 0 : index
    %4 = vector.load %arg2[%c0_3, %c0_4] : memref<32x32xf32, #tpu.memory_space<vmem>>, vector<32x32xf32>
    %cst_5 = arith.constant dense<0.000000e+00> : vector<2x32xf32>
    %5 = tpu.matmul %3, %4, %cst_5 {dimension_numbers = #tpu.dot_dimension_numbers<[1], [0], [0], [1], [0, 0, 1, 1], [], []>} : vector<2x32xf32>, vector<32x32xf32>, vector<2x32xf32> -> vector<2x32xf32>
    %c0_6 = arith.constant 0 : index
    %c0_7 = arith.constant 0 : index
    %6 = vector.load %arg3[%c0_6, %c0_7] : memref<1x32xf32, #tpu.memory_space<vmem>>, vector<1x32xf32>
    %7 = vector.broadcast %6 : vector<1x32xf32> to vector<2x32xf32>
    %8 = arith.addf %5, %7 : vector<2x32xf32>
    %cst_8 = arith.constant 0.000000e+00 : f32
    %9 = vector.broadcast %cst_8 : f32 to vector<2x32xf32>
    %10 = arith.maximumf %8, %9 : vector<2x32xf32>
    %c0_9 = arith.constant 0 : index
    %c0_10 = arith.constant 0 : index
    %11 = vector.load %arg4[%c0_9, %c0_10] : memref<32x128xf32, #tpu.memory_space<vmem>>, vector<32x128xf32>
    %cst_11 = arith.constant dense<0.000000e+00> : vector<2x128xf32>
    %12 = tpu.matmul %10, %11, %cst_11 {dimension_numbers = #tpu.dot_dimension_numbers<[1], [0], [0], [1], [0, 0, 1, 1], [], []>} : vector<2x32xf32>, vector<32x128xf32>, vector<2x128xf32> -> vector<2x128xf32>
    %c0_12 = arith.constant 0 : index
    %c0_13 = arith.constant 0 : index
    %13 = vector.load %arg5[%c0_12, %c0_13] : memref<1x128xf32, #tpu.memory_space<vmem>>, vector<1x128xf32>
    %14 = vector.broadcast %13 : vector<1x128xf32> to vector<2x128xf32>
    %15 = arith.addf %12, %14 : vector<2x128xf32>
    %c0_14 = arith.constant 0 : index
    %c0_15 = arith.constant 0 : index
    %16 = vector.load %arg6[%c0_14, %c0_15] : memref<2x128xf32, #tpu.memory_space<vmem>>, vector<2x128xf32>
    tpu.vector_store %arg6[%c0_14, %c0_15], %15 {strides = array<i32>} : memref<2x128xf32, #tpu.memory_space<vmem>>, vector<2x128xf32>,
    return
  }
  func.func @transform_0(%arg0: i32) -> (i32, i32, i32) {
    %c0_i32 = arith.constant 0 : i32
    %c0_i32_0 = arith.constant 0 : i32
    %c0_i32_1 = arith.constant 0 : i32
    return %arg0, %c0_i32, %c0_i32_0 : i32, i32, i32
  }
  func.func @transform_1(%arg0: i32) -> (i32, i32) {
    %c0_i32 = arith.constant 0 : i32
    %c0_i32_0 = arith.constant 0 : i32
    %c0_i32_1 = arith.constant 0 : i32
    return %c0_i32, %c0_i32_0 : i32, i32
  }
  func.func @transform_2(%arg0: i32) -> (i32, i32) {
    %c0_i32 = arith.constant 0 : i32
    %c0_i32_0 = arith.constant 0 : i32
    %c0_i32_1 = arith.constant 0 : i32
    return %c0_i32, %c0_i32_0 : i32, i32
  }
  func.func @transform_3(%arg0: i32) -> (i32, i32) {
    %c0_i32 = arith.constant 0 : i32
    %c0_i32_0 = arith.constant 0 : i32
    %c0_i32_1 = arith.constant 0 : i32
    return %c0_i32, %c0_i32_0 : i32, i32
  }
  func.func @transform_4(%arg0: i32) -> (i32, i32) {
    %c0_i32 = arith.constant 0 : i32
    %c0_i32_0 = arith.constant 0 : i32
    %c0_i32_1 = arith.constant 0 : i32
    return %c0_i32, %c0_i32_0 : i32, i32
  }
  func.func @transform_5(%arg0: i32) -> (i32, i32) {
    %c0_i32 = arith.constant 0 : i32
    %c0_i32_0 = arith.constant 0 : i32
    return %arg0, %c0_i32 : i32, i32
  }
}

</mosaic_0001>

<llo_original>
// kernel: tpu_custom_call.1
$region0: #{tpu_custom_call.1}
  #allocation0 [shape = 'u32[]', space=smem, size = 0x4, offset = 0x4, fixed_abs, tag = 'smem constant byte address 0x4 - core index']
  #allocation1 [shape = 'u32[144,128]{1,0:T(1,128)}', space=vmem, size = 0x12000, scoped, tag = 'internal scratch']
  %s0 = inlined_call_operand.hbm [shape: f32[2,2,32], index: 0, kind: input, shape index: {}]
  %s1 = inlined_call_operand.hbm [shape: f32[32,32], index: 1, kind: input, shape index: {}]
  %s2 = inlined_call_operand.vmem [shape: f32[1,32], index: 2, kind: input, shape index: {}]
  %s3 = inlined_call_operand.hbm [shape: f32[32,128], index: 3, kind: input, shape index: {}]
  %s4 = inlined_call_operand.vmem [shape: f32[1,128], index: 4, kind: input, shape index: {}]
  %s5 = inlined_call_operand.hbm [shape: f32[2,128], index: 5, kind: output, shape index: {}]
  %s6 = sld [smem:[#allocation0]]
  $region42: #{tpu_custom_call.1} parent=0
    _
  %s8 = ssub.s32 1, %s6
  %s9 = scalar_select 0, %s8, %s6
  $region1: #{tpu_custom_call.1} parent=0
    #allocation2 [shape = 'u8[2048]{0}', space=vmem, size = 0x800, scoped, tag = 'input window, operand 0, single buffered']
    #allocation3 [shape = 's32[1]{0}', space=sflag, size = 0x4, scoped, tag = 'scoped memory for tpu_custom_call.1']
    #allocation4 [shape = 's32[1]{0}', space=sflag, size = 0x4, scoped, tag = 'scoped memory for tpu_custom_call.1']
    #allocation5 [shape = 'u8[16384]{0}', space=vmem, size = 0x4000, scoped, tag = 'input window, operand 1, single buffered']
    #allocation6 [shape = 's32[1]{0}', space=sflag, size = 0x4, scoped, tag = 'scoped memory for tpu_custom_call.1']
    #allocation7 [shape = 'u8[16384]{0}', space=vmem, size = 0x4000, scoped, tag = 'input window, operand 3, single buffered']
    #allocation8 [shape = 'u8[1024]{0}', space=vmem, size = 0x400, scoped, tag = 'output window, operand 0, single buffered']
    %10 = vsyncpa [#allocation3], 0
    %11 = vsyncpa [#allocation6], 0
    %12 = vsyncpa [#allocation4], 0
    // Predicated region
    $region2: #{tpu_custom_call.1} parent=1 // pred_check
      _
    $region3: #{tpu_custom_call.1} parent=1 // pred_check_branch
      %14 = sbr.rel (0) target = $region5
    $region4: #{tpu_custom_call.1} parent=1 // pred_region
      %s16 = ssub.s32 64, 64
      %17 = vsyncadd [#allocation3], %s16
      %s18 = sshll.u32 [#allocation2], 4
      %s19 = int_to_ptr.vmem [resolvable:$true] %s18
      %24 = dma.hbm_to_vmem [thread:$0]  %s0, 64, %s19, [#allocation3], 32, 32, 2
    $region5: #{tpu_custom_call.1} parent=1 // pred_fallthru
      _
    // Predicated region
    $region6: #{tpu_custom_call.1} parent=1 // pred_check
      _
    $region7: #{tpu_custom_call.1} parent=1 // pred_check_branch
      %26 = sbr.rel (0) target = $region9
    $region8: #{tpu_custom_call.1} parent=1 // pred_region
      %s28 = ssub.s32 512, 512
      %29 = vsyncadd [#allocation6], %s28
      %s30 = sshll.u32 [#allocation5], 4
      %s31 = int_to_ptr.vmem [resolvable:$true] %s30
      %36 = dma.hbm_to_vmem [thread:$0]  %s1, 512, %s31, [#allocation6], 128, 128, 8
    $region9: #{tpu_custom_call.1} parent=1 // pred_fallthru
      _
    // Predicated region
    $region10: #{tpu_custom_call.1} parent=1 // pred_check
      _
    $region11: #{tpu_custom_call.1} parent=1 // pred_check_branch
      %38 = sbr.rel (0) target = $region13
    $region12: #{tpu_custom_call.1} parent=1 // pred_region
      _
    $region13: #{tpu_custom_call.1} parent=1 // pred_fallthru
      _
    // Predicated region
    $region14: #{tpu_custom_call.1} parent=1 // pred_check
      _
    $region15: #{tpu_custom_call.1} parent=1 // pred_check_branch
      %40 = sbr.rel (0) target = $region17
    $region16: #{tpu_custom_call.1} parent=1 // pred_region
      %s42 = ssub.s32 512, 512
      %43 = vsyncadd [#allocation6], %s42
      %s44 = sshll.u32 [#allocation7], 4
      %s45 = int_to_ptr.vmem [resolvable:$true] %s44
      %50 = dma.hbm_to_vmem [thread:$0]  %s3, 512, %s45, [#allocation6], 128, 128, 8
    $region17: #{tpu_custom_call.1} parent=1 // pred_fallthru
      _
    // Predicated region
    $region18: #{tpu_custom_call.1} parent=1 // pred_check
      _
    $region19: #{tpu_custom_call.1} parent=1 // pred_check_branch
      %52 = sbr.rel (0) target = $region21
    $region20: #{tpu_custom_call.1} parent=1 // pred_region
      _
    $region21: #{tpu_custom_call.1} parent=1 // pred_fallthru
      _
    // Predicated region
    $region22: #{tpu_custom_call.1} parent=1 // pred_check
      _
    $region23: #{tpu_custom_call.1} parent=1 // pred_check_branch
      %54 = sbr.rel (0) target = $region25
    $region24: #{tpu_custom_call.1} parent=1 // pred_region
      %55 = dma.done [#allocation3], 64
    $region25: #{tpu_custom_call.1} parent=1 // pred_fallthru
      _
    // Predicated region
    $region26: #{tpu_custom_call.1} parent=1 // pred_check
      _
    $region27: #{tpu_custom_call.1} parent=1 // pred_check_branch
      %57 = sbr.rel (0) target = $region29
    $region28: #{tpu_custom_call.1} parent=1 // pred_region
      %58 = dma.done [#allocation6], 512
    $region29: #{tpu_custom_call.1} parent=1 // pred_fallthru
      _
    // Predicated region
    $region30: #{tpu_custom_call.1} parent=1 // pred_check
      _
    $region31: #{tpu_custom_call.1} parent=1 // pred_check_branch
      %60 = sbr.rel (0) target = $region33
    $region32: #{tpu_custom_call.1} parent=1 // pred_region
      %61 = dma.done [#allocation6], 512
    $region33: #{tpu_custom_call.1} parent=1 // pred_fallthru
      _
    %v62 = vld [vmem:[#allocation2] sm:$0x3]
    %v63 = vld [vmem:[#allocation2 + $0x2] sm:$0x3]
    %vm64 = vcmask 254976
    %v65 = vsel %vm64, %v62, 0.0
    %v66 = vrot.slane %v65, 4
    %v67 = vadd.f32 %v65, %v66
    %v68 = vrot.slane %v67, 2
    %v69 = vadd.f32 %v67, %v68
    %v70 = vrot.slane %v69, 1
    %v71 = vadd.f32 %v69, %v70
    %v72 = vsel %vm64, %v63, 0.0
    %v73 = vrot.slane %v72, 4
    %v74 = vadd.f32 %v72, %v73
    %v75 = vrot.slane %v74, 2
    %v76 = vadd.f32 %v74, %v75
    %v77 = vrot.slane %v76, 1
    %v78 = vadd.f32 %v76, %v77
    %v79 = vrcp.pop 2.0
    %v80 = vmul.f32 %v71, %v79
    %v81 = vmul.f32 %v78, %v79
    %v82 = vld [vmem:[#allocation5] sm:$0xff]
    %v83 = vld [vmem:[#allocation5 + $0x8] sm:$0xff]
    %v84 = vld [vmem:[#allocation5 + $0x10] sm:$0xff]
    %v85 = vld [vmem:[#allocation5 + $0x18] sm:$0xff]
    %v86 = vld [vmem:[%s2] sm:$0x1]
    %v88 = vlaneseq
    %v89 = vshrl.u32 %v88, 7
    %v90 = vsub.s32 0, %v89
    %v91 = vrot.slane %v86, %v90
    %vm95 = vcmask 1041409
    %v96 = vsel %vm95, %v81, %v80
    %vm97 = vcmask 261120
    %v98 = vsel %vm97, %v96, 0
    %100 = vmatprep.subr.mxu0 0.0
    %101 = vmatpush1.msra.mxu0 %v82
    %102 = vmatprep.subr.mxu0 0.0
    %103 = vmatpush1.msra.mxu0 %v83
    %104 = vmatprep.subr.mxu0 0.0
    %105 = vmatpush1.msra.mxu0 %v84
    %106 = vmatprep.subr.mxu0 0.0
    %107 = vmatpush1.msra.mxu0 %v85
    %108 = vmatprep.subr.mxu0 0.0
    %109 = vmatpush1.msra.mxu0 0.0
    %110 = vmatprep.subr.mxu0 0.0
    %111 = vmatpush1.msra.mxu0 0.0
    %112 = vmatprep.subr.mxu0 0.0
    %113 = vmatpush1.msra.mxu0 0.0
    %114 = vmatprep.subr.mxu0 0.0
    %115 = vmatpush1.msra.mxu0 0.0
    %116 = vmatprep.subr.mxu0 0.0
    %117 = vmatpush1.msra.mxu0 0.0
    %118 = vmatprep.subr.mxu0 0.0
    %119 = vmatpush1.msra.mxu0 0.0
    %120 = vmatprep.subr.mxu0 0.0
    %121 = vmatpush1.msra.mxu0 0.0
    %122 = vmatprep.subr.mxu0 0.0
    %123 = vmatpush1.msra.mxu0 0.0
    %124 = vmatprep.subr.mxu0 0.0
    %125 = vmatpush1.msra.mxu0 0.0
    %126 = vmatprep.subr.mxu0 0.0
    %127 = vmatpush1.msra.mxu0 0.0
    %128 = vmatprep.subr.mxu0 0.0
    %129 = vmatpush1.msra.mxu0 0.0
    %130 = vmatprep.subr.mxu0 0.0
    %131 = vmatpush1.msra.mxu0 0.0
    %132 = vmatprep.subr.mxu0 0.0
    %133 = vmatpush1.msra.mxu0 0.0
    %134 = vmatprep.subr.mxu0 0.0
    %135 = vmatpush1.msra.mxu0 0.0
    %136 = vmatprep.subr.mxu0 0.0
    %137 = vmatpush1.msra.mxu0 0.0
    %138 = vmatprep.subr.mxu0 0.0
    %139 = vmatpush1.msra.mxu0 0.0
    %140 = vmatprep.subr.mxu0 0.0
    %141 = vmatpush1.msra.mxu0 0.0
    %142 = vmatprep.subr.mxu0 0.0
    %143 = vmatpush1.msra.mxu0 0.0
    %144 = vmatprep.subr.mxu0 0.0
    %145 = vmatpush1.msra.mxu0 0.0
    %146 = vmatprep.subr.mxu0 0.0
    %147 = vmatpush1.msra.mxu0 0.0
    %148 = vmatprep.subr.mxu0 0.0
    %149 = vmatpush1.msra.mxu0 0.0
    %150 = vmatprep.subr.mxu0 0.0
    %151 = vmatpush1.msra.mxu0 0.0
    %152 = vmatprep.subr.mxu0 0.0
    %153 = vmatpush1.msra.mxu0 0.0
    %154 = vmatprep.subr.mxu0 0.0
    %155 = vmatpush1.msra.mxu0 0.0
    %156 = vmatprep.subr.mxu0 0.0
    %157 = vmatpush1.msra.mxu0 0.0
    %158 = vmatprep.subr.mxu0 0.0
    %159 = vmatpush1.msra.mxu0 0.0
    %160 = vmatprep.subr.mxu0 0.0
    %161 = vmatpush1.msra.mxu0 0.0
    %162 = vmatprep.subr.mxu0 0.0
    %163 = vmatpush1.msra.mxu0 0.0
    %164 = vmatprep.mubr.f32.mxu0 0.0
    %165 = vmatmul.mubr.f32.gmra.mrb[0].mxu0 %v98
    %v166 = vpop.f32.mrb[0].mxu0
    %v167 = vadd.f32 %v91, %v166
    %v168 = vpop.f32.mrb[0].mxu0
    %169 = vdwg.mxu0
    %v170 = vmax.f32 %v167, 0.0
    %v171 = vld [vmem:[#allocation7] sm:$0xff]
    %v172 = vld [vmem:[#allocation7 + $0x8] sm:$0xff]
    %v173 = vld [vmem:[#allocation7 + $0x10] sm:$0xff]
    %v174 = vld [vmem:[#allocation7 + $0x18] sm:$0xff]
    %v175 = vld [vmem:[%s4] sm:$0x1]
    %v177 = vlaneseq
    %v178 = vshrl.u32 %v177, 7
    %v179 = vsub.s32 0, %v178
    %v180 = vrot.slane %v175, %v179
    %v183 = vsel %vm97, %v170, 0
    %185 = vmatprep.subr.mxu0 0.0
    %186 = vmatpush1.msra.mxu0 %v171
    %187 = vmatprep.subr.mxu0 0.0
    %188 = vmatpush1.msra.mxu0 %v172
    %189 = vmatprep.subr.mxu0 0.0
    %190 = vmatpush1.msra.mxu0 %v173
    %191 = vmatprep.subr.mxu0 0.0
    %192 = vmatpush1.msra.mxu0 %v174
    %193 = vmatprep.subr.mxu0 0.0
    %194 = vmatpush1.msra.mxu0 0.0
    %195 = vmatprep.subr.mxu0 0.0
    %196 = vmatpush1.msra.mxu0 0.0
    %197 = vmatprep.subr.mxu0 0.0
    %198 = vmatpush1.msra.mxu0 0.0
    %199 = vmatprep.subr.mxu0 0.0
    %200 = vmatpush1.msra.mxu0 0.0
    %201 = vmatprep.subr.mxu0 0.0
    %202 = vmatpush1.msra.mxu0 0.0
    %203 = vmatprep.subr.mxu0 0.0
    %204 = vmatpush1.msra.mxu0 0.0
    %205 = vmatprep.subr.mxu0 0.0
    %206 = vmatpush1.msra.mxu0 0.0
    %207 = vmatprep.subr.mxu0 0.0
    %208 = vmatpush1.msra.mxu0 0.0
    %209 = vmatprep.subr.mxu0 0.0
    %210 = vmatpush1.msra.mxu0 0.0
    %211 = vmatprep.subr.mxu0 0.0
    %212 = vmatpush1.msra.mxu0 0.0
    %213 = vmatprep.subr.mxu0 0.0
    %214 = vmatpush1.msra.mxu0 0.0
    %215 = vmatprep.subr.mxu0 0.0
    %216 = vmatpush1.msra.mxu0 0.0
    %217 = vmatprep.subr.mxu0 0.0
    %218 = vmatpush1.msra.mxu0 0.0
    %219 = vmatprep.subr.mxu0 0.0
    %220 = vmatpush1.msra.mxu0 0.0
    %221 = vmatprep.subr.mxu0 0.0
    %222 = vmatpush1.msra.mxu0 0.0
    %223 = vmatprep.subr.mxu0 0.0
    %224 = vmatpush1.msra.mxu0 0.0
    %225 = vmatprep.subr.mxu0 0.0
    %226 = vmatpush1.msra.mxu0 0.0
    %227 = vmatprep.subr.mxu0 0.0
    %228 = vmatpush1.msra.mxu0 0.0
    %229 = vmatprep.subr.mxu0 0.0
    %230 = vmatpush1.msra.mxu0 0.0
    %231 = vmatprep.subr.mxu0 0.0
    %232 = vmatpush1.msra.mxu0 0.0
    %233 = vmatprep.subr.mxu0 0.0
    %234 = vmatpush1.msra.mxu0 0.0
    %235 = vmatprep.subr.mxu0 0.0
    %236 = vmatpush1.msra.mxu0 0.0
    %237 = vmatprep.subr.mxu0 0.0
    %238 = vmatpush1.msra.mxu0 0.0
    %239 = vmatprep.subr.mxu0 0.0
    %240 = vmatpush1.msra.mxu0 0.0
    %241 = vmatprep.subr.mxu0 0.0
    %242 = vmatpush1.msra.mxu0 0.0
    %243 = vmatprep.subr.mxu0 0.0
    %244 = vmatpush1.msra.mxu0 0.0
    %245 = vmatprep.subr.mxu0 0.0
    %246 = vmatpush1.msra.mxu0 0.0
    %247 = vmatprep.subr.mxu0 0.0
    %248 = vmatpush1.msra.mxu0 0.0
    %249 = vmatprep.mubr.f32.mxu0 0.0
    %250 = vmatmul.mubr.f32.gmra.mrb[0].mxu0 %v183
    %v251 = vpop.f32.mrb[0].mxu0
    %v252 = vadd.f32 %v180, %v251
    %v253 = vpop.f32.mrb[0].mxu0
    %254 = vdwg.mxu0
    %255 = vst [vmem:[#allocation8] sm:$0x3] %v252
    // Predicated region
    $region34: #{tpu_custom_call.1} parent=1 // pred_check
      _
    $region35: #{tpu_custom_call.1} parent=1 // pred_check_branch
      %257 = sbr.rel (0) target = $region37
    $region36: #{tpu_custom_call.1} parent=1 // pred_region
      %s259 = ssub.s32 32, 32
      %260 = vsyncadd [#allocation4], %s259
      %s262 = sshll.u32 [#allocation8], 4
      %s263 = int_to_ptr.vmem [resolvable:$true] %s262
      %265 = dma.vmem_to_hbm [thread:$0]  %s263, 32, %s5, [#allocation4]
    $region37: #{tpu_custom_call.1} parent=1 // pred_fallthru
      _
    // Predicated region
    $region38: #{tpu_custom_call.1} parent=1 // pred_check
      _
    $region39: #{tpu_custom_call.1} parent=1 // pred_check_branch
      %267 = sbr.rel (0) target = $region41
    $region40: #{tpu_custom_call.1} parent=1 // pred_region
      %268 = dma.done [#allocation4], 32
    $region41: #{tpu_custom_call.1} parent=1 // pred_fallthru
      _
    %269 = vsyncpa [#allocation3], 1
    %270 = vsyncpa [#allocation6], 1
    %271 = vsyncpa [#allocation4], 1

</llo_original>
